<compile_context>
chip_gen: v5e
topology: v5e:2x2
jax: 0.10.0
libtpu: 0.0.40
codegen_flags: <defaults>
</compile_context>

<pallas_src>
import functools

import jax
import jax.numpy as jnp
from jax import lax
from jax.experimental import pallas as pl
from jax.experimental.pallas import tpu as pltpu


# ---------------------------------------------------------------------------
# Pallas kernels
# ---------------------------------------------------------------------------

def _matmul_shift_relu_kernel(a_ref, b_ref, sh_ref, o_ref):
    """Single-pass (full-K) matmul; BN scale pre-folded into B; +shift, ReLU.

    a_ref: (tm, K) bf16   b_ref: (K, tn) bf16   sh_ref: (1, tn) f32
    o_ref: (tm, tn) bf16 (f32 accumulate + f32 epilogue, bf16 store)
    """
    acc = jnp.dot(a_ref[...], b_ref[...], preferred_element_type=jnp.float32)
    o_ref[...] = jnp.maximum(acc + sh_ref[...], 0.0).astype(o_ref.dtype)


def _conv5_head_kernel(x_ref, w_ref, p_ref, o_ref):
    """Fused conv5 (1x1) + BN/ReLU + global avg+max pool + folded BatchNorm1d.

    One grid step per image.
    x_ref: (1, HW, Cin) bf16        w_ref: (Cin, 512) bf16 (BN scale folded)
    p_ref: (3, 512) f32             rows: [conv5 shift, head scale, head shift]
    o_ref: (1, 1, 512) f32
    """
    x = x_ref[0]                                                    # (HW, Cin)
    y = jnp.dot(x, w_ref[...], preferred_element_type=jnp.float32)  # (HW, 512)
    y = jnp.maximum(y + p_ref[0:1, :], 0.0)                         # conv5 BN+ReLU
    # Global pooling in f32 (per review: keep the reduction full precision).
    v = jnp.mean(y, axis=0, keepdims=True) + jnp.max(y, axis=0, keepdims=True)
    o_ref[0] = v * p_ref[1:2, :] + p_ref[2:3, :]                    # BatchNorm1d


# ---------------------------------------------------------------------------
# Pallas wrappers
# ---------------------------------------------------------------------------

def _pallas_matmul_shift_relu(a, b, shift, out_dtype=jnp.bfloat16):
    """a: (M, K) bf16, b: (K, N) bf16 (scale folded), shift: (N,) -> (M, N)."""
    M, K = a.shape
    _, N = b.shape
    # No M splitting (single TC on v5e/v6e; v7x parallelism comes from the
    # fused head's batch grid).  Full-dim blocks whenever they fit trivially.
    tm = M if M <= 256 else 128
    tn = N if N <= 128 else (256 if N % 256 == 0 else 128)
    sh = shift.reshape(1, N).astype(jnp.float32)

    return pl.pallas_call(
        _matmul_shift_relu_kernel,
        out_shape=jax.ShapeDtypeStruct((M, N), out_dtype),
        grid_spec=pltpu.PrefetchScalarGridSpec(
            num_scalar_prefetch=0,
            grid=(pl.cdiv(M, tm), pl.cdiv(N, tn)),
            in_specs=[
                pl.BlockSpec((tm, K), lambda i, j: (i, 0)),
                pl.BlockSpec((K, tn), lambda i, j: (0, j)),
                pl.BlockSpec((1, tn), lambda i, j: (0, j)),
            ],
            out_specs=pl.BlockSpec((tm, tn), lambda i, j: (i, j)),
        ),
        compiler_params=pltpu.CompilerParams(
            dimension_semantics=("parallel", "parallel")),
    )(a, b, sh)


def conv5_head(x, w5, shift5, head_scale, head_shift, use_pallas=True):
    """Fused conv5 (1x1, Cin->512) + BN/ReLU + global avg+max pool + BN1d.

    x: (N, H, W, Cin) bf16; w5: (Cin, 512) bf16 (scale folded); returns (N, 512) f32.
    """
    N, H, W, C = x.shape
    HW = H * W
    cout = w5.shape[1]
    x3 = x.reshape(N, HW, C)
    p = jnp.stack([shift5, head_scale, head_shift], axis=0).astype(jnp.float32)

    if use_pallas:
        out = pl.pallas_call(
            _conv5_head_kernel,
            out_shape=jax.ShapeDtypeStruct((N, 1, cout), jnp.float32),
            grid_spec=pltpu.PrefetchScalarGridSpec(
                num_scalar_prefetch=0,
                grid=(N,),
                in_specs=[
                    pl.BlockSpec((1, HW, C), lambda n: (n, 0, 0)),
                    pl.BlockSpec((C, cout), lambda n: (0, 0)),
                    pl.BlockSpec((3, cout), lambda n: (0, 0)),
                ],
                out_specs=pl.BlockSpec((1, 1, cout), lambda n: (n, 0, 0)),
            ),
            compiler_params=pltpu.CompilerParams(
                dimension_semantics=("parallel",)),
        )(x3, w5, p)
        return out.reshape(N, cout)

    # Reference path (plain JAX, same math / same bf16 operands).
    y = jnp.dot(x3, w5, preferred_element_type=jnp.float32)      # (N, HW, 512)
    y = jnp.maximum(y + shift5[None, None, :], 0.0)
    v = jnp.mean(y, axis=1) + jnp.max(y, axis=1)
    return v * head_scale[None, :] + head_shift[None, :]


# ---------------------------------------------------------------------------
# Glue (XLA convs for lane-starved early stages, im2col, pooling)
# ---------------------------------------------------------------------------

def conv_bn_relu_xla(x, w_scaled, shift, stride, padding):
    """Early-stage conv (cout < 128) on XLA. x/w bf16 (scale folded), f32 acc."""
    y = lax.conv_general_dilated(
        x, w_scaled,
        window_strides=(stride, stride),
        padding=((padding, padding), (padding, padding)),
        dimension_numbers=("NHWC", "HWIO", "NHWC"),
        preferred_element_type=jnp.float32)
    y = jnp.maximum(y + shift[None, None, None, :], 0.0)
    return y.astype(jnp.bfloat16)


def _im2col(x, kh, kw, stride, padding):
    """x: (N,H,W,C) -> patches (N,Ho,Wo,kh*kw,C)."""
    N, H, W, C = x.shape
    xp = jnp.pad(x, ((0, 0), (padding, padding), (padding, padding), (0, 0)))
    Ho = (H + 2 * padding - kh) // stride + 1
    Wo = (W + 2 * padding - kw) // stride + 1
    cols = [xp[:, i:i + stride * Ho:stride, j:j + stride * Wo:stride, :]
            for i in range(kh) for j in range(kw)]
    return jnp.stack(cols, axis=-2), Ho, Wo


def conv_bn_relu_pallas(x, w_scaled, shift, stride, padding, use_pallas=True):
    """Pallas conv (lane-dense cout). x bf16, w bf16 with BN scale folded in."""
    kh, kw, cin, cout = w_scaled.shape
    N = x.shape[0]
    if kh == 1 and kw == 1 and stride == 1 and padding == 0:
        Ho, Wo = x.shape[1], x.shape[2]
        a = x.reshape(N * Ho * Wo, cin)
    else:
        patches, Ho, Wo = _im2col(x, kh, kw, stride, padding)
        a = patches.reshape(N * Ho * Wo, kh * kw * cin)
    b = w_scaled.reshape(kh * kw * cin, cout)
    if use_pallas:
        y = _pallas_matmul_shift_relu(a, b, shift)
    else:
        y = jnp.dot(a, b, preferred_element_type=jnp.float32)
        y = jnp.maximum(y + shift[None, :], 0.0).astype(jnp.bfloat16)
    return y.reshape(N, Ho, Wo, cout)


def maxpool2d_3x3_s2(x):
    # Lane-starved (C=16) -> leave to XLA's reduce_window (per perf review).
    return lax.reduce_window(
        x, jnp.asarray(-jnp.inf, x.dtype), lax.max,
        window_dimensions=(1, 3, 3, 1),
        window_strides=(1, 2, 2, 1),
        padding=((0, 0), (1, 1), (1, 1), (0, 0)))


# ---------------------------------------------------------------------------
# Forward pass
# ---------------------------------------------------------------------------

def osnet_reid_forward(x_nchw, params, use_pallas=True):
    # NCHW (PyTorch) -> NHWC, single bf16 cast at the top.
    x = jnp.transpose(x_nchw, (0, 2, 3, 1)).astype(jnp.bfloat16)
    x = conv_bn_relu_xla(x, *params["conv1"], stride=2, padding=3)
    x = maxpool2d_3x3_s2(x)
    x = conv_bn_relu_xla(x, *params["conv2"], stride=1, padding=1)
    x = conv_bn_relu_xla(x, *params["conv3"], stride=2, padding=1)
    x = conv_bn_relu_pallas(x, *params["conv4"], stride=1, padding=1,
                            use_pallas=use_pallas)
    w5, shift5 = params["conv5"]
    hs, ht = params["last_bn"]
    return conv5_head(x, w5, shift5, hs, ht, use_pallas=use_pallas)   # (N, 512)


# ---------------------------------------------------------------------------
# Deterministic parameter init (synthetic; BN folded into weight-scale + shift)
# ---------------------------------------------------------------------------

def init_params(key, eps=1e-5):
    cfgs = [("conv1", 7, 3, 16), ("conv2", 3, 16, 32), ("conv3", 3, 32, 64),
            ("conv4", 3, 64, 128), ("conv5", 1, 128, 512)]
    params = {}
    for name, k, cin, cout in cfgs:
        key, k1, k2, k3, k4, k5 = jax.random.split(key, 6)
        w = jax.random.normal(k1, (k, k, cin, cout), jnp.float32) / ((k * k * cin) ** 0.5)
        gamma = 1.0 + 0.1 * jax.random.normal(k2, (cout,), jnp.float32)
        beta = 0.1 * jax.random.normal(k3, (cout,), jnp.float32)
        rmean = 0.1 * jax.random.normal(k4, (cout,), jnp.float32)
        rvar = 1.0 + 0.1 * jnp.abs(jax.random.normal(k5, (cout,), jnp.float32))
        scale = gamma * lax.rsqrt(rvar + eps)
        shift = beta - rmean * scale
        # Fold BN scale into the weight in f32 *before* the bf16 cast (review).
        w_scaled = (w * scale[None, None, None, :]).astype(jnp.bfloat16)
        if name == "conv5":
            params[name] = (w_scaled.reshape(cin, cout), shift)   # 1x1: store (K, N)
        else:
            params[name] = (w_scaled, shift)
    key, k1, k2, k3, k4 = jax.random.split(key, 5)
    gamma = 1.0 + 0.1 * jax.random.normal(k1, (512,), jnp.float32)
    beta = 0.1 * jax.random.normal(k2, (512,), jnp.float32)
    rmean = 0.1 * jax.random.normal(k3, (512,), jnp.float32)
    rvar = 1.0 + 0.1 * jnp.abs(jax.random.normal(k4, (512,), jnp.float32))
    scale = gamma * lax.rsqrt(rvar + eps)
    params["last_bn"] = (scale, beta - rmean * scale)
    return params


if __name__ == "__main__":
    key = jax.random.PRNGKey(0)
    pkey, xkey = jax.random.split(key)
    params = init_params(pkey)
    x = jax.random.normal(xkey, (2, 3, 32, 32), jnp.float32)   # NCHW input

    fwd = jax.jit(functools.partial(osnet_reid_forward, use_pallas=True))
    out = jax.block_until_ready(fwd(x, params))

    ref = osnet_reid_forward(x, params, use_pallas=False)
    assert out.shape == (2, 512), out.shape
    # Both paths share identical bf16 activations/weights; differences are only
    # MXU vs XLA f32 accumulation order.
    assert jnp.allclose(out, ref, atol=1e-2, rtol=1e-2), "Pallas output mismatch"
    print("KERNEL_OK")
</pallas_src>

<mosaic_0001>
module attributes {stable_mosaic.version = 11 : i64} {
  func.func @_matmul_shift_relu_kernel(%arg0: i32, %arg1: i32, %arg2: memref<32x576xbf16, #tpu.memory_space<vmem>>, %arg3: memref<576x128xbf16, #tpu.memory_space<vmem>>, %arg4: memref<1x128xf32, #tpu.memory_space<vmem>>, %arg5: memref<32x128xbf16, #tpu.memory_space<vmem>>) attributes {dimension_semantics = [#tpu.dimension_semantics<parallel>, #tpu.dimension_semantics<parallel>], iteration_bounds = array<i64: 1, 1>, scalar_prefetch = 0 : i64, scratch_operands = 0 : i64, tpu.core_type = #tpu.core_type<tc>, window_params = [{transform_indices = @transform_0, window_bounds = array<i64: 32, 576>}, {transform_indices = @transform_1, window_bounds = array<i64: 576, 128>}, {transform_indices = @transform_2, window_bounds = array<i64: 1, 128>}, {transform_indices = @transform_3, window_bounds = array<i64: 32, 128>}]} {
    %c0 = arith.constant 0 : index
    %c0_0 = arith.constant 0 : index
    %0 = vector.load %arg2[%c0, %c0_0] : memref<32x576xbf16, #tpu.memory_space<vmem>>, vector<32x576xbf16>
    %c0_1 = arith.constant 0 : index
    %c0_2 = arith.constant 0 : index
    %1 = vector.load %arg3[%c0_1, %c0_2] : memref<576x128xbf16, #tpu.memory_space<vmem>>, vector<576x128xbf16>
    %cst = arith.constant dense<0.000000e+00> : vector<32x128xf32>
    %2 = tpu.matmul %0, %1, %cst {dimension_numbers = #tpu.dot_dimension_numbers<[1], [0], [0], [1], [0, 0, 1, 1], [], []>} : vector<32x576xbf16>, vector<576x128xbf16>, vector<32x128xf32> -> vector<32x128xf32>
    %c0_3 = arith.constant 0 : index
    %c0_4 = arith.constant 0 : index
    %3 = vector.load %arg4[%c0_3, %c0_4] : memref<1x128xf32, #tpu.memory_space<vmem>>, vector<1x128xf32>
    %4 = vector.broadcast %3 : vector<1x128xf32> to vector<32x128xf32>
    %5 = arith.addf %2, %4 : vector<32x128xf32>
    %cst_5 = arith.constant 0.000000e+00 : f32
    %6 = vector.broadcast %cst_5 : f32 to vector<32x128xf32>
    %7 = arith.maximumf %5, %6 : vector<32x128xf32>
    %8 = arith.truncf %7 : vector<32x128xf32> to vector<32x128xbf16>
    %c0_6 = arith.constant 0 : index
    %c0_7 = arith.constant 0 : index
    %9 = vector.load %arg5[%c0_6, %c0_7] : memref<32x128xbf16, #tpu.memory_space<vmem>>, vector<32x128xbf16>
    tpu.vector_store %arg5[%c0_6, %c0_7], %8 {strides = array<i32>} : memref<32x128xbf16, #tpu.memory_space<vmem>>, vector<32x128xbf16>,
    return
  }
  func.func @transform_0(%arg0: i32, %arg1: i32) -> (i32, i32) {
    %c0_i32 = arith.constant 0 : i32
    %c0_i32_0 = arith.constant 0 : i32
    return %arg0, %c0_i32 : i32, i32
  }
  func.func @transform_1(%arg0: i32, %arg1: i32) -> (i32, i32) {
    %c0_i32 = arith.constant 0 : i32
    %c0_i32_0 = arith.constant 0 : i32
    return %c0_i32, %arg1 : i32, i32
  }
  func.func @transform_2(%arg0: i32, %arg1: i32) -> (i32, i32) {
    %c0_i32 = arith.constant 0 : i32
    %c0_i32_0 = arith.constant 0 : i32
    return %c0_i32, %arg1 : i32, i32
  }
  func.func @transform_3(%arg0: i32, %arg1: i32) -> (i32, i32) {
    %c0_i32 = arith.constant 0 : i32
    return %arg0, %arg1 : i32, i32
  }
}

module attributes {stable_mosaic.version = 11 : i64} {
  func.func @_conv5_head_kernel(%arg0: i32, %arg1: memref<1x16x128xbf16, #tpu.memory_space<vmem>>, %arg2: memref<128x512xbf16, #tpu.memory_space<vmem>>, %arg3: memref<3x512xf32, #tpu.memory_space<vmem>>, %arg4: memref<1x1x512xf32, #tpu.memory_space<vmem>>) attributes {dimension_semantics = [#tpu.dimension_semantics<parallel>], iteration_bounds = array<i64: 2>, scalar_prefetch = 0 : i64, scratch_operands = 0 : i64, tpu.core_type = #tpu.core_type<tc>, window_params = [{transform_indices = @transform_0, window_bounds = array<i64: 1, 16, 128>}, {pipeline_mode = #tpu.pipeline_mode<synchronous>, transform_indices = @transform_1, window_bounds = array<i64: 128, 512>}, {pipeline_mode = #tpu.pipeline_mode<synchronous>, transform_indices = @transform_2, window_bounds = array<i64: 3, 512>}, {transform_indices = @transform_3, window_bounds = array<i64: 1, 1, 512>}]} {
    %c0 = arith.constant 0 : index
    %c0_0 = arith.constant 0 : index
    %c0_1 = arith.constant 0 : index
    %0 = vector.load %arg1[%c0, %c0_0, %c0_1] : memref<1x16x128xbf16, #tpu.memory_space<vmem>>, vector<1x16x128xbf16>
    %1 = vector.shape_cast %0 : vector<1x16x128xbf16> to vector<16x128xbf16>
    %c0_2 = arith.constant 0 : index
    %c0_3 = arith.constant 0 : index
    %2 = vector.load %arg2[%c0_2, %c0_3] : memref<128x512xbf16, #tpu.memory_space<vmem>>, vector<128x512xbf16>
    %cst = arith.constant dense<0.000000e+00> : vector<16x512xf32>
    %3 = tpu.matmul %1, %2, %cst {dimension_numbers = #tpu.dot_dimension_numbers<[1], [0], [0], [1], [0, 0, 1, 1], [], []>} : vector<16x128xbf16>, vector<128x512xbf16>, vector<16x512xf32> -> vector<16x512xf32>
    %c0_4 = arith.constant 0 : index
    %c0_5 = arith.constant 0 : index
    %4 = vector.load %arg3[%c0_4, %c0_5] : memref<3x512xf32, #tpu.memory_space<vmem>>, vector<1x512xf32>
    %5 = vector.broadcast %4 : vector<1x512xf32> to vector<16x512xf32>
    %6 = arith.addf %3, %5 : vector<16x512xf32>
    %cst_6 = arith.constant 0.000000e+00 : f32
    %7 = vector.broadcast %cst_6 : f32 to vector<16x512xf32>
    %8 = arith.maximumf %6, %7 : vector<16x512xf32>
    %cst_7 = arith.constant dense<0.000000e+00> : vector<512xf32>
    %9 = vector.multi_reduction <add>, %8, %cst_7 [0] : vector<16x512xf32> to vector<512xf32>
    %10 = vector.shape_cast %9 : vector<512xf32> to vector<1x512xf32>
    %cst_8 = arith.constant 1.600000e+01 : f32
    %11 = vector.broadcast %cst_8 : f32 to vector<1x512xf32>
    %12 = arith.divf %10, %11 : vector<1x512xf32>
    %cst_9 = arith.constant dense<0xFF800000> : vector<512xf32>
    %13 = vector.multi_reduction <maximumf>, %8, %cst_9 [0] : vector<16x512xf32> to vector<512xf32>
    %14 = vector.shape_cast %13 : vector<512xf32> to vector<1x512xf32>
    %15 = arith.addf %12, %14 : vector<1x512xf32>
    %c1 = arith.constant 1 : index
    %c0_10 = arith.constant 0 : index
    %16 = vector.load %arg3[%c1, %c0_10] : memref<3x512xf32, #tpu.memory_space<vmem>>, vector<1x512xf32>
    %17 = arith.mulf %15, %16 : vector<1x512xf32>
    %c2 = arith.constant 2 : index
    %c0_11 = arith.constant 0 : index
    %18 = vector.load %arg3[%c2, %c0_11] : memref<3x512xf32, #tpu.memory_space<vmem>>, vector<1x512xf32>
    %19 = arith.addf %17, %18 : vector<1x512xf32>
    %c0_12 = arith.constant 0 : index
    %c0_13 = arith.constant 0 : index
    %c0_14 = arith.constant 0 : index
    %20 = vector.load %arg4[%c0_12, %c0_13, %c0_14] : memref<1x1x512xf32, #tpu.memory_space<vmem>>, vector<1x1x512xf32>
    %21 = vector.shape_cast %20 : vector<1x1x512xf32> to vector<1x512xf32>
    %22 = vector.shape_cast %19 : vector<1x512xf32> to vector<1x1x512xf32>
    tpu.vector_store %arg4[%c0_12, %c0_13, %c0_14], %22 {strides = array<i32>} : memref<1x1x512xf32, #tpu.memory_space<vmem>>, vector<1x1x512xf32>,
    return
  }
  func.func @transform_0(%arg0: i32) -> (i32, i32, i32) {
    %c0_i32 = arith.constant 0 : i32
    %c0_i32_0 = arith.constant 0 : i32
    %c0_i32_1 = arith.constant 0 : i32
    return %arg0, %c0_i32, %c0_i32_0 : i32, i32, i32
  }
  func.func @transform_1(%arg0: i32) -> (i32, i32) {
    %c0_i32 = arith.constant 0 : i32
    %c0_i32_0 = arith.constant 0 : i32
    %c0_i32_1 = arith.constant 0 : i32
    return %c0_i32, %c0_i32_0 : i32, i32
  }
  func.func @transform_2(%arg0: i32) -> (i32, i32) {
    %c0_i32 = arith.constant 0 : i32
    %c0_i32_0 = arith.constant 0 : i32
    %c0_i32_1 = arith.constant 0 : i32
    return %c0_i32, %c0_i32_0 : i32, i32
  }
  func.func @transform_3(%arg0: i32) -> (i32, i32, i32) {
    %c0_i32 = arith.constant 0 : i32
    %c0_i32_0 = arith.constant 0 : i32
    %c0_i32_1 = arith.constant 0 : i32
    return %arg0, %c0_i32, %c0_i32_0 : i32, i32, i32
  }
}

</mosaic_0001>

<llo_original>
// kernel: osnet_reid_forward.3
$region0: #{osnet_reid_forward.3}
  #allocation0 [shape = 'u32[]', space=smem, size = 0x4, offset = 0x4, fixed_abs, tag = 'smem constant byte address 0x4 - core index']
  #allocation1 [shape = 'u32[72,128]{1,0:T(1,128)}', space=vmem, size = 0x9000, scoped, tag = 'internal scratch']
  %s0 = inlined_call_operand.vmem [shape: bf16[2,16,128], index: 0, kind: input, shape index: {}]
  %s1 = inlined_call_operand.vmem [shape: bf16[128,512], index: 1, kind: input, shape index: {}]
  %s2 = inlined_call_operand.vmem [shape: f32[3,512], index: 2, kind: input, shape index: {}]
  %s3 = inlined_call_operand.vmem [shape: f32[2,1,512], index: 3, kind: output, shape index: {}]
  %s4 = sld [smem:[#allocation0]]
  $region45: #{osnet_reid_forward.3} parent=0
    _
  %s6 = ssub.s32 1, %s4
  %s7 = scalar_select 0, %s6, %s4
  loop: start=0, step=1, limit=4
  $region2: #{osnet_reid_forward.3} parent=0 // loop_pre_header
    _
  $region3: #{osnet_reid_forward.3} parent=0 // loop_header
    %s9 = sphi 0, %s13
    %p10 = scmp.ge.s32.totalorder %s9, 4
    %s19 = sphi 0, %s21
    %s22 = sphi 0, %s19
    %s23 = sphi 0, %s22
    %s39 = sphi 0, %s23
    %s43 = sphi 0, %s43
    %s45 = sphi 0, %s43
    %s46 = sphi 0, %s45
    %s60 = sphi 0, %s46
    %s64 = sphi 0, %s64
    %s66 = sphi 0, %s64
    %s67 = sphi 0, %s66
    %s81 = sphi 0, %s67
    %s87 = sphi 0, %s89
    %s90 = sphi 0, %s87
    %s91 = sphi 0, %s90
    %s107 = sphi 0, %s91
  $region4: #{osnet_reid_forward.3} parent=0 // loop_header_branch
    %12 = sbr.rel (%p10) target = $region8
  $region5: #{osnet_reid_forward.3} parent=0 // loop_body
    %s14 = ssub.s32 %s9, 1
    %s15 = ssub.s32 %s9, 2
    %s16 = sadd.s32 %s9, 1
    %s17 = ssub.s32 %s9, %s16
    %p18 = scmp.eq.s32.totalorder %s17, 0
    %s20 = sadd.s32 %s19, 1
    %s21 = scalar_select %p18, %s19, %s20
    %p24 = pneg %p18
    %p25 = scmp.eq.s32.totalorder %s9, 1
    %p26 = por %p24, %p25
    %p27 = scmp.ne.s32.totalorder %s19, %s22
    %p28 = scmp.eq.s32.totalorder %s9, 0
    %p29 = por %p27, %p28
    %p30 = scmp.ne.s32.totalorder %s19, %s22
    %p31 = scmp.eq.s32.totalorder %s14, 1
    %p32 = por %p30, %p31
    %p33 = scmp.ne.s32.totalorder %s22, %s23
    %p34 = scmp.eq.s32.totalorder %s14, 0
    %p35 = por %p33, %p34
    %p36 = scmp.ne.s32.totalorder %s22, %s23
    %p37 = scmp.eq.s32.totalorder %s15, 1
    %p38 = por %p36, %p37
    %p40 = scmp.ne.s32.totalorder %s23, %s39
    %p41 = scmp.eq.s32.totalorder %s15, 0
    %p42 = por %p40, %p41
    %s44 = sadd.s32 %s43, 1
    %p47 = scmp.eq.s32.totalorder %s9, 1
    %p48 = scmp.ne.s32.totalorder %s43, %s45
    %p49 = scmp.eq.s32.totalorder %s9, 0
    %p50 = por %p48, %p49
    %p51 = scmp.ne.s32.totalorder %s43, %s45
    %p52 = scmp.eq.s32.totalorder %s14, 1
    %p53 = por %p51, %p52
    %p54 = scmp.ne.s32.totalorder %s45, %s46
    %p55 = scmp.eq.s32.totalorder %s14, 0
    %p56 = por %p54, %p55
    %p57 = scmp.ne.s32.totalorder %s45, %s46
    %p58 = scmp.eq.s32.totalorder %s15, 1
    %p59 = por %p57, %p58
    %p61 = scmp.ne.s32.totalorder %s46, %s60
    %p62 = scmp.eq.s32.totalorder %s15, 0
    %p63 = por %p61, %p62
    %s65 = sadd.s32 %s64, 1
    %p68 = scmp.eq.s32.totalorder %s9, 1
    %p69 = scmp.ne.s32.totalorder %s64, %s66
    %p70 = scmp.eq.s32.totalorder %s9, 0
    %p71 = por %p69, %p70
    %p72 = scmp.ne.s32.totalorder %s64, %s66
    %p73 = scmp.eq.s32.totalorder %s14, 1
    %p74 = por %p72, %p73
    %p75 = scmp.ne.s32.totalorder %s66, %s67
    %p76 = scmp.eq.s32.totalorder %s14, 0
    %p77 = por %p75, %p76
    %p78 = scmp.ne.s32.totalorder %s66, %s67
    %p79 = scmp.eq.s32.totalorder %s15, 1
    %p80 = por %p78, %p79
    %p82 = scmp.ne.s32.totalorder %s67, %s81
    %p83 = scmp.eq.s32.totalorder %s15, 0
    %p84 = por %p82, %p83
    %s85 = ssub.s32 %s9, %s16
    %p86 = scmp.eq.s32.totalorder %s85, 0
    %s88 = sadd.s32 %s87, 1
    %s89 = scalar_select %p86, %s87, %s88
    %p92 = pneg %p86
    %p93 = scmp.eq.s32.totalorder %s9, 1
    %p94 = por %p92, %p93
    %p95 = scmp.ne.s32.totalorder %s87, %s90
    %p96 = scmp.eq.s32.totalorder %s9, 0
    %p97 = por %p95, %p96
    %p98 = scmp.ne.s32.totalorder %s87, %s90
    %p99 = scmp.eq.s32.totalorder %s14, 1
    %p100 = por %p98, %p99
    %p101 = scmp.ne.s32.totalorder %s90, %s91
    %p102 = scmp.eq.s32.totalorder %s14, 0
    %p103 = por %p101, %p102
    %p104 = scmp.ne.s32.totalorder %s90, %s91
    %p105 = scmp.eq.s32.totalorder %s15, 1
    %p106 = por %p104, %p105
    %p108 = scmp.ne.s32.totalorder %s91, %s107
    %p109 = scmp.eq.s32.totalorder %s15, 0
    %p110 = por %p108, %p109
    %p111 = scmp.le.s32.totalorder 1, %s9
    %p112 = scmp.lt.s32.totalorder %s9, 3
    %p113 = pnand %p111, %p112
    %p114 = pneg %p113
    // Predicated region
    $region9: #{osnet_reid_forward.3} parent=5 // pred_check
      _
    $region10: #{osnet_reid_forward.3} parent=5 // pred_check_branch
      %116 = sbr.rel (%p113) target = $region12
    $region11: #{osnet_reid_forward.3} parent=5 // pred_region
      %s117 = ssub.s32 %s9, 1
      // Predicated region
      $region13: #{osnet_reid_forward.3} parent=11 // pred_check
        %p118 = pneg %p56
      $region14: #{osnet_reid_forward.3} parent=11 // pred_check_branch
        %120 = sbr.rel (%p118) target = $region16
      $region15: #{osnet_reid_forward.3} parent=11 // pred_region
        _
      $region16: #{osnet_reid_forward.3} parent=11 // pred_fallthru
        _
      // Predicated region
      $region17: #{osnet_reid_forward.3} parent=11 // pred_check
        %p121 = pneg %p77
      $region18: #{osnet_reid_forward.3} parent=11 // pred_check_branch
        %123 = sbr.rel (%p121) target = $region20
      $region19: #{osnet_reid_forward.3} parent=11 // pred_region
        _
      $region20: #{osnet_reid_forward.3} parent=11 // pred_fallthru
        _
    $region12: #{osnet_reid_forward.3} parent=5 // pred_fallthru
      _
    %p124 = scmp.lt.s32.totalorder %s9, 2
    // Predicated region
    $region21: #{osnet_reid_forward.3} parent=5 // pred_check
      %p125 = pneg %p124
    $region22: #{osnet_reid_forward.3} parent=5 // pred_check_branch
      %127 = sbr.rel (%p125) target = $region24
    $region23: #{osnet_reid_forward.3} parent=5 // pred_region
      // Predicated region
      $region25: #{osnet_reid_forward.3} parent=23 // pred_check
        %p128 = pneg %p29
      $region26: #{osnet_reid_forward.3} parent=23 // pred_check_branch
        %130 = sbr.rel (%p128) target = $region28
      $region27: #{osnet_reid_forward.3} parent=23 // pred_region
        %p131 = scmp.lt.s32.totalorder %s9, 1
        %s132 = scalar_select %p131, %s9, 1
        %s133 = smul.addr %s132, 2
        %s134 = smul.addr %s133, 4
        %s135 = scalar_lea.vmem %s0, %s134
      $region28: #{osnet_reid_forward.3} parent=23 // pred_fallthru
        _
    $region24: #{osnet_reid_forward.3} parent=5 // pred_fallthru
      _
    %p136 = scmp.le.s32.totalorder 1, %s9
    %p137 = scmp.lt.s32.totalorder %s9, 3
    %p138 = pnand %p136, %p137
    %p139 = pneg %p138
    // Predicated region
    $region29: #{osnet_reid_forward.3} parent=5 // pred_check
      _
    $region30: #{osnet_reid_forward.3} parent=5 // pred_check_branch
      %141 = sbr.rel (%p138) target = $region32
    $region31: #{osnet_reid_forward.3} parent=5 // pred_region
      %s142 = ssub.s32 %s9, 1
      %p143 = scmp.lt.s32.totalorder %s14, 1
      %s144 = scalar_select %p143, %s14, 1
      %s145 = smul.addr %s144, 2
      %s146 = smul.addr %s145, 4
      %s147 = scalar_lea.vmem %s0, %s146
      %p148 = pneg %p35
      %p149 = pneg %p32
      %p150 = pneg %p56
      %p151 = pneg %p53
      %p152 = pneg %p77
      %p153 = pneg %p74
      %p154 = pneg %p103
      %p155 = pneg %p100
      %p156 = scmp.lt.s32.totalorder %s14, 1
      %s157 = scalar_select %p156, %s14, 1
      %s158 = smul.addr %s157, 4
      %s159 = scalar_lea.vmem %s3, %s158
      %p160 = scmp.lt.s32.totalorder %s14, 1
      %s161 = scalar_select %p160, %s14, 1
      %s162 = smul.addr %s161, 2
      %s163 = smul.addr %s162, 4
      %s164 = scalar_lea.vmem %s0, %s163
      %p165 = scmp.lt.s32.totalorder %s14, 1
      %s166 = scalar_select %p165, %s14, 1
      %s167 = smul.addr %s166, 4
      %s168 = scalar_lea.vmem %s3, %s167
      %v169 = vld [vmem:[%s164] sm:$0xf]
      %v170 = vld [vmem:[%s164 + $0x4] sm:$0xf]
      %v171 = vld [vmem:[%s1] sm:$0xff]
      %v172 = vld [vmem:[%s1 + $0x8] sm:$0xff]
      %v173 = vld [vmem:[%s1 + $0x10] sm:$0xff]
      %v174 = vld [vmem:[%s1 + $0x18] sm:$0xff]
      %v175 = vld [vmem:[%s1 + $0x20] sm:$0xff]
      %v176 = vld [vmem:[%s1 + $0x28] sm:$0xff]
      %v177 = vld [vmem:[%s1 + $0x30] sm:$0xff]
      %v178 = vld [vmem:[%s1 + $0x38] sm:$0xff]
      %v179 = vld [vmem:[%s1 + $0x40] sm:$0xff]
      %v180 = vld [vmem:[%s1 + $0x48] sm:$0xff]
      %v181 = vld [vmem:[%s1 + $0x50] sm:$0xff]
      %v182 = vld [vmem:[%s1 + $0x58] sm:$0xff]
      %v183 = vld [vmem:[%s1 + $0x60] sm:$0xff]
      %v184 = vld [vmem:[%s1 + $0x68] sm:$0xff]
      %v185 = vld [vmem:[%s1 + $0x70] sm:$0xff]
      %v186 = vld [vmem:[%s1 + $0x78] sm:$0xff]
      %v187 = vld [vmem:[%s1 + $0x80] sm:$0xff]
      %v188 = vld [vmem:[%s1 + $0x88] sm:$0xff]
      %v189 = vld [vmem:[%s1 + $0x90] sm:$0xff]
      %v190 = vld [vmem:[%s1 + $0x98] sm:$0xff]
      %v191 = vld [vmem:[%s1 + $0xa0] sm:$0xff]
      %v192 = vld [vmem:[%s1 + $0xa8] sm:$0xff]
      %v193 = vld [vmem:[%s1 + $0xb0] sm:$0xff]
      %v194 = vld [vmem:[%s1 + $0xb8] sm:$0xff]
      %v195 = vld [vmem:[%s1 + $0xc0] sm:$0xff]
      %v196 = vld [vmem:[%s1 + $0xc8] sm:$0xff]
      %v197 = vld [vmem:[%s1 + $0xd0] sm:$0xff]
      %v198 = vld [vmem:[%s1 + $0xd8] sm:$0xff]
      %v199 = vld [vmem:[%s1 + $0xe0] sm:$0xff]
      %v200 = vld [vmem:[%s1 + $0xe8] sm:$0xff]
      %v201 = vld [vmem:[%s1 + $0xf0] sm:$0xff]
      %v202 = vld [vmem:[%s1 + $0xf8] sm:$0xff]
      %v203 = vld [vmem:[%s2] ss:$4 sm:$0xf]
      %v205 = vperm.slane %v203, 0
      %v206 = vperm.slane %v203, 1
      %v207 = vperm.slane %v203, 2
      %v208 = vperm.slane %v203, 3
      %v215 = vunpack.c.l.b16 %v169
      %v216 = vunpack.c.l.b16 %v170
      %v217 = vpack.c.b16 %v216, %v215
      %v251 = vunpack.c.l.b16 %v171
      %v252 = vunpack.c.h.b16 %v171
      %v253 = vunpack.c.l.b16 %v172
      %v254 = vunpack.c.h.b16 %v172
      %v255 = vunpack.c.l.b16 %v173
      %v256 = vunpack.c.h.b16 %v173
      %v257 = vunpack.c.l.b16 %v174
      %v258 = vunpack.c.h.b16 %v174
      %v259 = vunpack.c.l.b16 %v175
      %v260 = vunpack.c.h.b16 %v175
      %v261 = vunpack.c.l.b16 %v176
      %v262 = vunpack.c.h.b16 %v176
      %v263 = vunpack.c.l.b16 %v177
      %v264 = vunpack.c.h.b16 %v177
      %v265 = vunpack.c.l.b16 %v178
      %v266 = vunpack.c.h.b16 %v178
      %v267 = vunpack.c.l.b16 %v179
      %v268 = vunpack.c.h.b16 %v179
      %v269 = vunpack.c.l.b16 %v180
      %v270 = vunpack.c.h.b16 %v180
      %v271 = vunpack.c.l.b16 %v181
      %v272 = vunpack.c.h.b16 %v181
      %v273 = vunpack.c.l.b16 %v182
      %v274 = vunpack.c.h.b16 %v182
      %v275 = vunpack.c.l.b16 %v183
      %v276 = vunpack.c.h.b16 %v183
      %v277 = vunpack.c.l.b16 %v184
      %v278 = vunpack.c.h.b16 %v184
      %v279 = vunpack.c.l.b16 %v185
      %v280 = vunpack.c.h.b16 %v185
      %v281 = vunpack.c.l.b16 %v186
      %v282 = vunpack.c.h.b16 %v186
      %v283 = vunpack.c.l.b16 %v187
      %v284 = vunpack.c.h.b16 %v187
      %v285 = vunpack.c.l.b16 %v188
      %v286 = vunpack.c.h.b16 %v188
      %v287 = vunpack.c.l.b16 %v189
      %v288 = vunpack.c.h.b16 %v189
      %v289 = vunpack.c.l.b16 %v190
      %v290 = vunpack.c.h.b16 %v190
      %v291 = vunpack.c.l.b16 %v191
      %v292 = vunpack.c.h.b16 %v191
      %v293 = vunpack.c.l.b16 %v192
      %v294 = vunpack.c.h.b16 %v192
      %v295 = vunpack.c.l.b16 %v193
      %v296 = vunpack.c.h.b16 %v193
      %v297 = vunpack.c.l.b16 %v194
      %v298 = vunpack.c.h.b16 %v194
      %v299 = vunpack.c.l.b16 %v195
      %v300 = vunpack.c.h.b16 %v195
      %v301 = vunpack.c.l.b16 %v196
      %v302 = vunpack.c.h.b16 %v196
      %v303 = vunpack.c.l.b16 %v197
      %v304 = vunpack.c.h.b16 %v197
      %v305 = vunpack.c.l.b16 %v198
      %v306 = vunpack.c.h.b16 %v198
      %v307 = vunpack.c.l.b16 %v199
      %v308 = vunpack.c.h.b16 %v199
      %v309 = vunpack.c.l.b16 %v200
      %v310 = vunpack.c.h.b16 %v200
      %v311 = vunpack.c.l.b16 %v201
      %v312 = vunpack.c.h.b16 %v201
      %v313 = vunpack.c.l.b16 %v202
      %v314 = vunpack.c.h.b16 %v202
      %v315 = vpack.c.b16 %v255, %v251
      %v316 = vpack.c.b16 %v256, %v252
      %v317 = vpack.c.b16 %v257, %v253
      %v318 = vpack.c.b16 %v258, %v254
      %v319 = vpack.c.b16 %v263, %v259
      %v320 = vpack.c.b16 %v264, %v260
      %v321 = vpack.c.b16 %v265, %v261
      %v322 = vpack.c.b16 %v266, %v262
      %v323 = vpack.c.b16 %v271, %v267
      %v324 = vpack.c.b16 %v272, %v268
      %v325 = vpack.c.b16 %v273, %v269
      %v326 = vpack.c.b16 %v274, %v270
      %v327 = vpack.c.b16 %v279, %v275
      %v328 = vpack.c.b16 %v280, %v276
      %v329 = vpack.c.b16 %v281, %v277
      %v330 = vpack.c.b16 %v282, %v278
      %v331 = vpack.c.b16 %v287, %v283
      %v332 = vpack.c.b16 %v288, %v284
      %v333 = vpack.c.b16 %v289, %v285
      %v334 = vpack.c.b16 %v290, %v286
      %v335 = vpack.c.b16 %v295, %v291
      %v336 = vpack.c.b16 %v296, %v292
      %v337 = vpack.c.b16 %v297, %v293
      %v338 = vpack.c.b16 %v298, %v294
      %v339 = vpack.c.b16 %v303, %v299
      %v340 = vpack.c.b16 %v304, %v300
      %v341 = vpack.c.b16 %v305, %v301
      %v342 = vpack.c.b16 %v306, %v302
      %v343 = vpack.c.b16 %v311, %v307
      %v344 = vpack.c.b16 %v312, %v308
      %v345 = vpack.c.b16 %v313, %v309
      %v346 = vpack.c.b16 %v314, %v310
      %379 = vmatpush.bf16.msra.mxu0 %v343
      %380 = vmatpush.bf16.msra.mxu0 %v339
      %381 = vmatpush.bf16.msra.mxu0 %v335
      %382 = vmatpush.bf16.msra.mxu0 %v331
      %383 = vmatpush.bf16.msra.mxu0 %v327
      %384 = vmatpush.bf16.msra.mxu0 %v323
      %385 = vmatpush.bf16.msra.mxu0 %v319
      %386 = vmatpush.bf16.msra.mxu0 %v315
      %387 = vmatmul.bf16.gmra.mxu0 %v217
      %v388 = vpop.f32.mrf.mxu0
      %v389 = vadd.f32 %v205, %v388
      %v390 = vpop.f32.mrf.mxu0
      %v391 = vadd.f32 %v205, %v390
      %392 = vdwg.mxu0
      %393 = vmatpush.bf16.msra.mxu0 %v344
      %394 = vmatpush.bf16.msra.mxu0 %v340
      %395 = vmatpush.bf16.msra.mxu0 %v336
      %396 = vmatpush.bf16.msra.mxu0 %v332
      %397 = vmatpush.bf16.msra.mxu0 %v328
      %398 = vmatpush.bf16.msra.mxu0 %v324
      %399 = vmatpush.bf16.msra.mxu0 %v320
      %400 = vmatpush.bf16.msra.mxu0 %v316
      %401 = vmatmul.bf16.gmra.mxu0 %v217
      %v402 = vpop.f32.mrf.mxu0
      %v403 = vadd.f32 %v206, %v402
      %v404 = vpop.f32.mrf.mxu0
      %v405 = vadd.f32 %v206, %v404
      %406 = vdwg.mxu0
      %407 = vmatpush.bf16.msra.mxu0 %v345
      %408 = vmatpush.bf16.msra.mxu0 %v341
      %409 = vmatpush.bf16.msra.mxu0 %v337
      %410 = vmatpush.bf16.msra.mxu0 %v333
      %411 = vmatpush.bf16.msra.mxu0 %v329
      %412 = vmatpush.bf16.msra.mxu0 %v325
      %413 = vmatpush.bf16.msra.mxu0 %v321
      %414 = vmatpush.bf16.msra.mxu0 %v317
      %415 = vmatmul.bf16.gmra.mxu0 %v217
      %v416 = vpop.f32.mrf.mxu0
      %v417 = vadd.f32 %v207, %v416
      %v418 = vpop.f32.mrf.mxu0
      %v419 = vadd.f32 %v207, %v418
      %420 = vdwg.mxu0
      %421 = vmatpush.bf16.msra.mxu0 %v346
      %422 = vmatpush.bf16.msra.mxu0 %v342
      %423 = vmatpush.bf16.msra.mxu0 %v338
      %424 = vmatpush.bf16.msra.mxu0 %v334
      %425 = vmatpush.bf16.msra.mxu0 %v330
      %426 = vmatpush.bf16.msra.mxu0 %v326
      %427 = vmatpush.bf16.msra.mxu0 %v322
      %428 = vmatpush.bf16.msra.mxu0 %v318
      %429 = vmatmul.bf16.gmra.mxu0 %v217
      %v430 = vpop.f32.mrf.mxu0
      %v431 = vadd.f32 %v208, %v430
      %v432 = vpop.f32.mrf.mxu0
      %v433 = vadd.f32 %v208, %v432
      %434 = vdwg.mxu0
      %v435 = vmax.f32 %v389, 0.0
      %v436 = vmax.f32 %v403, 0.0
      %v437 = vmax.f32 %v417, 0.0
      %v438 = vmax.f32 %v431, 0.0
      %v439 = vmax.f32 %v391, 0.0
      %v440 = vmax.f32 %v405, 0.0
      %v441 = vmax.f32 %v419, 0.0
      %v442 = vmax.f32 %v433, 0.0
      %v443 = vadd.f32 %v435, %v439
      %v444 = vrot.slane %v443, 4
      %v445 = vadd.f32 %v443, %v444
      %v446 = vrot.slane %v445, 2
      %v447 = vadd.f32 %v445, %v446
      %v448 = vrot.slane %v447, 1
      %v449 = vadd.f32 %v447, %v448
      %v450 = vadd.f32 %v436, %v440
      %v451 = vrot.slane %v450, 4
      %v452 = vadd.f32 %v450, %v451
      %v453 = vrot.slane %v452, 2
      %v454 = vadd.f32 %v452, %v453
      %v455 = vrot.slane %v454, 1
      %v456 = vadd.f32 %v454, %v455
      %v457 = vadd.f32 %v437, %v441
      %v458 = vrot.slane %v457, 4
      %v459 = vadd.f32 %v457, %v458
      %v460 = vrot.slane %v459, 2
      %v461 = vadd.f32 %v459, %v460
      %v462 = vrot.slane %v461, 1
      %v463 = vadd.f32 %v461, %v462
      %v464 = vadd.f32 %v438, %v442
      %v465 = vrot.slane %v464, 4
      %v466 = vadd.f32 %v464, %v465
      %v467 = vrot.slane %v466, 2
      %v468 = vadd.f32 %v466, %v467
      %v469 = vrot.slane %v468, 1
      %v470 = vadd.f32 %v468, %v469
      %v471 = vrcp.pop 16.0
      %v472 = vmul.f32 16.0, %v471
      %v473 = vsub.f32 1.0, %v472
      %v474 = vmul.f32 %v471, %v473
      %v475 = vadd.f32 %v471, %v474
      %vm476 = vweird.f32 %v471
      %v477 = vsel %vm476, %v471, %v475
      %v478 = vmul.f32 %v449, %v477
      %v479 = vmul.f32 %v456, %v477
      %v480 = vmul.f32 %v463, %v477
      %v481 = vmul.f32 %v470, %v477
      %v482 = vmax.f32 %v435, %v439
      %v483 = vrot.slane %v482, 4
      %v484 = vmax.f32 %v482, %v483
      %v485 = vrot.slane %v484, 2
      %v486 = vmax.f32 %v484, %v485
      %v487 = vrot.slane %v486, 1
      %v488 = vmax.f32 %v486, %v487
      %v489 = vmax.f32 %v436, %v440
      %v490 = vrot.slane %v489, 4
      %v491 = vmax.f32 %v489, %v490
      %v492 = vrot.slane %v491, 2
      %v493 = vmax.f32 %v491, %v492
      %v494 = vrot.slane %v493, 1
      %v495 = vmax.f32 %v493, %v494
      %v496 = vmax.f32 %v437, %v441
      %v497 = vrot.slane %v496, 4
      %v498 = vmax.f32 %v496, %v497
      %v499 = vrot.slane %v498, 2
      %v500 = vmax.f32 %v498, %v499
      %v501 = vrot.slane %v500, 1
      %v502 = vmax.f32 %v500, %v501
      %v503 = vmax.f32 %v438, %v442
      %v504 = vrot.slane %v503, 4
      %v505 = vmax.f32 %v503, %v504
      %v506 = vrot.slane %v505, 2
      %v507 = vmax.f32 %v505, %v506
      %v508 = vrot.slane %v507, 1
      %v509 = vmax.f32 %v507, %v508
      %v510 = vadd.f32 %v478, %v488
      %v511 = vadd.f32 %v479, %v495
      %v512 = vadd.f32 %v480, %v502
      %v513 = vadd.f32 %v481, %v509
      %s514 = scalar_lea.vmem %s2, 1
      %v515 = vld [vmem:[%s514] ss:$4 sm:$0xf]
      %v517 = vperm.slane %v515, 0
      %v518 = vperm.slane %v515, 1
      %v519 = vperm.slane %v515, 2
      %v520 = vperm.slane %v515, 3
      %v525 = vmul.f32 %v510, %v517
      %v526 = vmul.f32 %v511, %v518
      %v527 = vmul.f32 %v512, %v519
      %v528 = vmul.f32 %v513, %v520
      %s529 = scalar_lea.vmem %s2, 2
      %v530 = vld [vmem:[%s529] ss:$4 sm:$0xf]
      %v532 = vperm.slane %v530, 0
      %v533 = vperm.slane %v530, 1
      %v534 = vperm.slane %v530, 2
      %v535 = vperm.slane %v530, 3
      %v540 = vadd.f32 %v525, %v532
      %v541 = vadd.f32 %v526, %v533
      %v542 = vadd.f32 %v527, %v534
      %v543 = vadd.f32 %v528, %v535
      %v548 = vrot.slane %v541, 7
      %v549 = vrot.slane %v542, 6
      %v550 = vrot.slane %v543, 5
      %vm551 = vcmask 1040384
      %v552 = vsel %vm551, %v540, %v548
      %vm553 = vcmask 1042434
      %v554 = vsel %vm553, %v549, %v550
      %vm555 = vcmask 1041408
      %v556 = vsel %vm555, %v552, %v554
      %v558 = vlaneseq
      %vm559 = vcmp.ge.s32.totalorder %v558, 0
      %vm560 = vcmp.lt.s32.totalorder %v558, 512
      %vm561 = vmand %vm559, %vm560
      %562 = vst.msk [vmem:[%s168] sm:$0xf] %vm561, %v556
      %p563 = scmp.lt.s32.totalorder %s14, 1
      %s564 = scalar_select %p563, %s14, 1
      %s565 = smul.addr %s564, 4
      %s566 = scalar_lea.vmem %s3, %s565
      // Predicated region
      $region33: #{osnet_reid_forward.3} parent=31 // pred_check
        %p567 = pneg %p100
      $region34: #{osnet_reid_forward.3} parent=31 // pred_check_branch
        %569 = sbr.rel (%p567) target = $region36
      $region35: #{osnet_reid_forward.3} parent=31 // pred_region
        _
      $region36: #{osnet_reid_forward.3} parent=31 // pred_fallthru
        _
    $region32: #{osnet_reid_forward.3} parent=5 // pred_fallthru
      _
    %p570 = scmp.le.s32.totalorder 2, %s9
    // Predicated region
    $region37: #{osnet_reid_forward.3} parent=5 // pred_check
      %p571 = pneg %p570
    $region38: #{osnet_reid_forward.3} parent=5 // pred_check_branch
      %573 = sbr.rel (%p571) target = $region40
    $region39: #{osnet_reid_forward.3} parent=5 // pred_region
      %s574 = ssub.s32 %s9, 2
      // Predicated region
      $region41: #{osnet_reid_forward.3} parent=39 // pred_check
        %p575 = pneg %p106
      $region42: #{osnet_reid_forward.3} parent=39 // pred_check_branch
        %577 = sbr.rel (%p575) target = $region44
      $region43: #{osnet_reid_forward.3} parent=39 // pred_region
        %p578 = scmp.lt.s32.totalorder %s15, 1
        %s579 = scalar_select %p578, %s15, 1
        %s580 = smul.addr %s579, 4
        %s581 = scalar_lea.vmem %s3, %s580
      $region44: #{osnet_reid_forward.3} parent=39 // pred_fallthru
        _
    $region40: #{osnet_reid_forward.3} parent=5 // pred_fallthru
      _
  $region6: #{osnet_reid_forward.3} parent=0 // loop_footer
    %s13 = sadd.s32 1, %s9
  $region7: #{osnet_reid_forward.3} parent=0 // loop_footer_branch
    %8 = sbr.rel target = $region3
  $region8: #{osnet_reid_forward.3} parent=0 // loop_exit
    _

// kernel: osnet_reid_forward.2
$region0: #{osnet_reid_forward.2}
  #allocation0 [shape = 'u32[]', space=smem, size = 0x4, offset = 0x4, fixed_abs, tag = 'smem constant byte address 0x4 - core index']
  #allocation1 [shape = 'u32[72,128]{1,0:T(1,128)}', space=vmem, size = 0x9000, scoped, tag = 'internal scratch']
  %s0 = inlined_call_operand.vmem [shape: bf16[32,576], index: 0, kind: input, shape index: {}]
  %s1 = inlined_call_operand.vmem [shape: bf16[576,128], index: 1, kind: input, shape index: {}]
  %s2 = inlined_call_operand.vmem [shape: f32[1,128], index: 2, kind: input, shape index: {}]
  %s3 = inlined_call_operand.vmem [shape: bf16[32,128], index: 3, kind: output, shape index: {}]
  %s4 = sld [smem:[#allocation0]]
  $region22: #{osnet_reid_forward.2} parent=0
    _
  %s6 = ssub.s32 1, %s4
  %s7 = scalar_select 0, %s6, %s4
  // Predicated region
  $region2: #{osnet_reid_forward.2} parent=0 // pred_check
    _
  $region3: #{osnet_reid_forward.2} parent=0 // pred_check_branch
    %9 = sbr.rel (0) target = $region5
  $region4: #{osnet_reid_forward.2} parent=0 // pred_region
    _
  $region5: #{osnet_reid_forward.2} parent=0 // pred_fallthru
    _
  // Predicated region
  $region6: #{osnet_reid_forward.2} parent=0 // pred_check
    _
  $region7: #{osnet_reid_forward.2} parent=0 // pred_check_branch
    %11 = sbr.rel (0) target = $region9
  $region8: #{osnet_reid_forward.2} parent=0 // pred_region
    _
  $region9: #{osnet_reid_forward.2} parent=0 // pred_fallthru
    _
  // Predicated region
  $region10: #{osnet_reid_forward.2} parent=0 // pred_check
    _
  $region11: #{osnet_reid_forward.2} parent=0 // pred_check_branch
    %13 = sbr.rel (0) target = $region13
  $region12: #{osnet_reid_forward.2} parent=0 // pred_region
    _
  $region13: #{osnet_reid_forward.2} parent=0 // pred_fallthru
    _
  %v15 = vld [vmem:[%s0] sm:$0xff]
  %v16 = vld [vmem:[%s0 + $0x8] sm:$0xff]
  %v17 = vld [vmem:[%s0 + $0x10] sm:$0xf]
  %v18 = vld [vmem:[%s0 + $0x14] sm:$0xff]
  %v19 = vld [vmem:[%s0 + $0x1c] sm:$0xff]
  %v20 = vld [vmem:[%s0 + $0x24] sm:$0xf]
  %v21 = vld [vmem:[%s0 + $0x28] sm:$0xff]
  %v22 = vld [vmem:[%s0 + $0x30] sm:$0xff]
  %v23 = vld [vmem:[%s0 + $0x38] sm:$0xf]
  %v24 = vld [vmem:[%s0 + $0x3c] sm:$0xff]
  %v25 = vld [vmem:[%s0 + $0x44] sm:$0xff]
  %v26 = vld [vmem:[%s0 + $0x4c] sm:$0xf]
  %v27 = vld [vmem:[%s1] sm:$0xf]
  %v28 = vld [vmem:[%s1 + $0x4] sm:$0xf]
  %v29 = vld [vmem:[%s1 + $0x8] sm:$0xf]
  %v30 = vld [vmem:[%s1 + $0xc] sm:$0xf]
  %v31 = vld [vmem:[%s1 + $0x10] sm:$0xf]
  %v32 = vld [vmem:[%s1 + $0x14] sm:$0xf]
  %v33 = vld [vmem:[%s1 + $0x18] sm:$0xf]
  %v34 = vld [vmem:[%s1 + $0x1c] sm:$0xf]
  %v35 = vld [vmem:[%s1 + $0x20] sm:$0xf]
  %v36 = vld [vmem:[%s1 + $0x24] sm:$0xf]
  %v37 = vld [vmem:[%s1 + $0x28] sm:$0xf]
  %v38 = vld [vmem:[%s1 + $0x2c] sm:$0xf]
  %v39 = vld [vmem:[%s1 + $0x30] sm:$0xf]
  %v40 = vld [vmem:[%s1 + $0x34] sm:$0xf]
  %v41 = vld [vmem:[%s1 + $0x38] sm:$0xf]
  %v42 = vld [vmem:[%s1 + $0x3c] sm:$0xf]
  %v43 = vld [vmem:[%s1 + $0x40] sm:$0xf]
  %v44 = vld [vmem:[%s1 + $0x44] sm:$0xf]
  %v45 = vld [vmem:[%s1 + $0x48] sm:$0xf]
  %v46 = vld [vmem:[%s1 + $0x4c] sm:$0xf]
  %v47 = vld [vmem:[%s1 + $0x50] sm:$0xf]
  %v48 = vld [vmem:[%s1 + $0x54] sm:$0xf]
  %v49 = vld [vmem:[%s1 + $0x58] sm:$0xf]
  %v50 = vld [vmem:[%s1 + $0x5c] sm:$0xf]
  %v51 = vld [vmem:[%s1 + $0x60] sm:$0xf]
  %v52 = vld [vmem:[%s1 + $0x64] sm:$0xf]
  %v53 = vld [vmem:[%s1 + $0x68] sm:$0xf]
  %v54 = vld [vmem:[%s1 + $0x6c] sm:$0xf]
  %v55 = vld [vmem:[%s1 + $0x70] sm:$0xf]
  %v56 = vld [vmem:[%s1 + $0x74] sm:$0xf]
  %v57 = vld [vmem:[%s1 + $0x78] sm:$0xf]
  %v58 = vld [vmem:[%s1 + $0x7c] sm:$0xf]
  %v59 = vld [vmem:[%s1 + $0x80] sm:$0xf]
  %v60 = vld [vmem:[%s1 + $0x84] sm:$0xf]
  %v61 = vld [vmem:[%s1 + $0x88] sm:$0xf]
  %v62 = vld [vmem:[%s1 + $0x8c] sm:$0xf]
  %v63 = vld [vmem:[%s1 + $0x90] sm:$0xf]
  %v64 = vld [vmem:[%s1 + $0x94] sm:$0xf]
  %v65 = vld [vmem:[%s1 + $0x98] sm:$0xf]
  %v66 = vld [vmem:[%s1 + $0x9c] sm:$0xf]
  %v67 = vld [vmem:[%s1 + $0xa0] sm:$0xf]
  %v68 = vld [vmem:[%s1 + $0xa4] sm:$0xf]
  %v69 = vld [vmem:[%s1 + $0xa8] sm:$0xf]
  %v70 = vld [vmem:[%s1 + $0xac] sm:$0xf]
  %v71 = vld [vmem:[%s1 + $0xb0] sm:$0xf]
  %v72 = vld [vmem:[%s1 + $0xb4] sm:$0xf]
  %v73 = vld [vmem:[%s1 + $0xb8] sm:$0xf]
  %v74 = vld [vmem:[%s1 + $0xbc] sm:$0xf]
  %v75 = vld [vmem:[%s1 + $0xc0] sm:$0xf]
  %v76 = vld [vmem:[%s1 + $0xc4] sm:$0xf]
  %v77 = vld [vmem:[%s1 + $0xc8] sm:$0xf]
  %v78 = vld [vmem:[%s1 + $0xcc] sm:$0xf]
  %v79 = vld [vmem:[%s1 + $0xd0] sm:$0xf]
  %v80 = vld [vmem:[%s1 + $0xd4] sm:$0xf]
  %v81 = vld [vmem:[%s1 + $0xd8] sm:$0xf]
  %v82 = vld [vmem:[%s1 + $0xdc] sm:$0xf]
  %v83 = vld [vmem:[%s1 + $0xe0] sm:$0xf]
  %v84 = vld [vmem:[%s1 + $0xe4] sm:$0xf]
  %v85 = vld [vmem:[%s1 + $0xe8] sm:$0xf]
  %v86 = vld [vmem:[%s1 + $0xec] sm:$0xf]
  %v87 = vld [vmem:[%s1 + $0xf0] sm:$0xf]
  %v88 = vld [vmem:[%s1 + $0xf4] sm:$0xf]
  %v89 = vld [vmem:[%s1 + $0xf8] sm:$0xf]
  %v90 = vld [vmem:[%s1 + $0xfc] sm:$0xf]
  %v91 = vld [vmem:[%s1 + $0x100] sm:$0xf]
  %v92 = vld [vmem:[%s1 + $0x104] sm:$0xf]
  %v93 = vld [vmem:[%s1 + $0x108] sm:$0xf]
  %v94 = vld [vmem:[%s1 + $0x10c] sm:$0xf]
  %v95 = vld [vmem:[%s1 + $0x110] sm:$0xf]
  %v96 = vld [vmem:[%s1 + $0x114] sm:$0xf]
  %v97 = vld [vmem:[%s1 + $0x118] sm:$0xf]
  %v98 = vld [vmem:[%s1 + $0x11c] sm:$0xf]
  %v99 = vld [vmem:[%s2] sm:$0x1]
  %v101 = vperm.slane %v99, 0
  %v115 = vunpack.c.l.b16 %v15
  %v116 = vunpack.c.h.b16 %v15
  %v117 = vunpack.c.l.b16 %v16
  %v118 = vunpack.c.h.b16 %v16
  %v119 = vunpack.c.l.b16 %v17
  %v120 = vunpack.c.l.b16 %v18
  %v121 = vunpack.c.h.b16 %v18
  %v122 = vunpack.c.l.b16 %v19
  %v123 = vunpack.c.h.b16 %v19
  %v124 = vunpack.c.l.b16 %v20
  %v125 = vunpack.c.l.b16 %v21
  %v126 = vunpack.c.h.b16 %v21
  %v127 = vunpack.c.l.b16 %v22
  %v128 = vunpack.c.h.b16 %v22
  %v129 = vunpack.c.l.b16 %v23
  %v130 = vunpack.c.l.b16 %v24
  %v131 = vunpack.c.h.b16 %v24
  %v132 = vunpack.c.l.b16 %v25
  %v133 = vunpack.c.h.b16 %v25
  %v134 = vunpack.c.l.b16 %v26
  %v135 = vpack.c.b16 %v120, %v115
  %v136 = vpack.c.b16 %v121, %v116
  %v137 = vpack.c.b16 %v122, %v117
  %v138 = vpack.c.b16 %v123, %v118
  %v139 = vpack.c.b16 %v124, %v119
  %v140 = vpack.c.b16 %v130, %v125
  %v141 = vpack.c.b16 %v131, %v126
  %v142 = vpack.c.b16 %v132, %v127
  %v143 = vpack.c.b16 %v133, %v128
  %v144 = vpack.c.b16 %v134, %v129
  %v225 = vunpack.c.l.b16 %v27
  %v226 = vunpack.c.l.b16 %v28
  %v227 = vunpack.c.l.b16 %v29
  %v228 = vunpack.c.l.b16 %v30
  %v229 = vunpack.c.l.b16 %v31
  %v230 = vunpack.c.l.b16 %v32
  %v231 = vunpack.c.l.b16 %v33
  %v232 = vunpack.c.l.b16 %v34
  %v233 = vunpack.c.l.b16 %v35
  %v234 = vunpack.c.l.b16 %v36
  %v235 = vunpack.c.l.b16 %v37
  %v236 = vunpack.c.l.b16 %v38
  %v237 = vunpack.c.l.b16 %v39
  %v238 = vunpack.c.l.b16 %v40
  %v239 = vunpack.c.l.b16 %v41
  %v240 = vunpack.c.l.b16 %v42
  %v241 = vunpack.c.l.b16 %v43
  %v242 = vunpack.c.l.b16 %v44
  %v243 = vunpack.c.l.b16 %v45
  %v244 = vunpack.c.l.b16 %v46
  %v245 = vunpack.c.l.b16 %v47
  %v246 = vunpack.c.l.b16 %v48
  %v247 = vunpack.c.l.b16 %v49
  %v248 = vunpack.c.l.b16 %v50
  %v249 = vunpack.c.l.b16 %v51
  %v250 = vunpack.c.l.b16 %v52
  %v251 = vunpack.c.l.b16 %v53
  %v252 = vunpack.c.l.b16 %v54
  %v253 = vunpack.c.l.b16 %v55
  %v254 = vunpack.c.l.b16 %v56
  %v255 = vunpack.c.l.b16 %v57
  %v256 = vunpack.c.l.b16 %v58
  %v257 = vunpack.c.l.b16 %v59
  %v258 = vunpack.c.l.b16 %v60
  %v259 = vunpack.c.l.b16 %v61
  %v260 = vunpack.c.l.b16 %v62
  %v261 = vunpack.c.l.b16 %v63
  %v262 = vunpack.c.l.b16 %v64
  %v263 = vunpack.c.l.b16 %v65
  %v264 = vunpack.c.l.b16 %v66
  %v265 = vunpack.c.l.b16 %v67
  %v266 = vunpack.c.l.b16 %v68
  %v267 = vunpack.c.l.b16 %v69
  %v268 = vunpack.c.l.b16 %v70
  %v269 = vunpack.c.l.b16 %v71
  %v270 = vunpack.c.l.b16 %v72
  %v271 = vunpack.c.l.b16 %v73
  %v272 = vunpack.c.l.b16 %v74
  %v273 = vunpack.c.l.b16 %v75
  %v274 = vunpack.c.l.b16 %v76
  %v275 = vunpack.c.l.b16 %v77
  %v276 = vunpack.c.l.b16 %v78
  %v277 = vunpack.c.l.b16 %v79
  %v278 = vunpack.c.l.b16 %v80
  %v279 = vunpack.c.l.b16 %v81
  %v280 = vunpack.c.l.b16 %v82
  %v281 = vunpack.c.l.b16 %v83
  %v282 = vunpack.c.l.b16 %v84
  %v283 = vunpack.c.l.b16 %v85
  %v284 = vunpack.c.l.b16 %v86
  %v285 = vunpack.c.l.b16 %v87
  %v286 = vunpack.c.l.b16 %v88
  %v287 = vunpack.c.l.b16 %v89
  %v288 = vunpack.c.l.b16 %v90
  %v289 = vunpack.c.l.b16 %v91
  %v290 = vunpack.c.l.b16 %v92
  %v291 = vunpack.c.l.b16 %v93
  %v292 = vunpack.c.l.b16 %v94
  %v293 = vunpack.c.l.b16 %v95
  %v294 = vunpack.c.l.b16 %v96
  %v295 = vunpack.c.l.b16 %v97
  %v296 = vunpack.c.l.b16 %v98
  %v297 = vpack.c.b16 %v226, %v225
  %v298 = vpack.c.b16 %v228, %v227
  %v299 = vpack.c.b16 %v230, %v229
  %v300 = vpack.c.b16 %v232, %v231
  %v301 = vpack.c.b16 %v234, %v233
  %v302 = vpack.c.b16 %v236, %v235
  %v303 = vpack.c.b16 %v238, %v237
  %v304 = vpack.c.b16 %v240, %v239
  %v305 = vpack.c.b16 %v242, %v241
  %v306 = vpack.c.b16 %v244, %v243
  %v307 = vpack.c.b16 %v246, %v245
  %v308 = vpack.c.b16 %v248, %v247
  %v309 = vpack.c.b16 %v250, %v249
  %v310 = vpack.c.b16 %v252, %v251
  %v311 = vpack.c.b16 %v254, %v253
  %v312 = vpack.c.b16 %v256, %v255
  %v313 = vpack.c.b16 %v258, %v257
  %v314 = vpack.c.b16 %v260, %v259
  %v315 = vpack.c.b16 %v262, %v261
  %v316 = vpack.c.b16 %v264, %v263
  %v317 = vpack.c.b16 %v266, %v265
  %v318 = vpack.c.b16 %v268, %v267
  %v319 = vpack.c.b16 %v270, %v269
  %v320 = vpack.c.b16 %v272, %v271
  %v321 = vpack.c.b16 %v274, %v273
  %v322 = vpack.c.b16 %v276, %v275
  %v323 = vpack.c.b16 %v278, %v277
  %v324 = vpack.c.b16 %v280, %v279
  %v325 = vpack.c.b16 %v282, %v281
  %v326 = vpack.c.b16 %v284, %v283
  %v327 = vpack.c.b16 %v286, %v285
  %v328 = vpack.c.b16 %v288, %v287
  %v329 = vpack.c.b16 %v290, %v289
  %v330 = vpack.c.b16 %v292, %v291
  %v331 = vpack.c.b16 %v294, %v293
  %v332 = vpack.c.b16 %v296, %v295
  %vm369 = vcmask 523264
  %v371 = vsel %vm369, %v139, 0
  %v374 = vsel %vm369, %v144, 0
  %376 = vmatpush.bf16.msra.mxu0 %v304
  %377 = vmatpush.bf16.msra.mxu0 %v303
  %378 = vmatpush.bf16.msra.mxu0 %v302
  %379 = vmatpush.bf16.msra.mxu0 %v301
  %380 = vmatpush.bf16.msra.mxu0 %v300
  %381 = vmatpush.bf16.msra.mxu0 %v299
  %382 = vmatpush.bf16.msra.mxu0 %v298
  %383 = vmatpush.bf16.msra.mxu0 %v297
  %384 = vmatmul.bf16.gmra.mxu0 %v135
  %v385 = vpop.f32.mrf.mxu0
  %v386 = vadd.f32 %v101, %v385
  %v387 = vpop.f32.mrf.mxu0
  %v388 = vadd.f32 %v101, %v387
  %389 = vmatmul.bf16.gmra.mxu0 %v140
  %v390 = vpop.f32.mrf.mxu0
  %v391 = vadd.f32 %v101, %v390
  %v392 = vpop.f32.mrf.mxu0
  %v393 = vadd.f32 %v101, %v392
  %394 = vdwg.mxu0
  %395 = vmatpush.bf16.msra.mxu0 %v312
  %396 = vmatpush.bf16.msra.mxu0 %v311
  %397 = vmatpush.bf16.msra.mxu0 %v310
  %398 = vmatpush.bf16.msra.mxu0 %v309
  %399 = vmatpush.bf16.msra.mxu0 %v308
  %400 = vmatpush.bf16.msra.mxu0 %v307
  %401 = vmatpush.bf16.msra.mxu0 %v306
  %402 = vmatpush.bf16.msra.mxu0 %v305
  %403 = vmatmul.bf16.gmra.mxu0 %v136
  %v404 = vpop.f32.mrf.mxu0
  %v405 = vadd.f32 %v386, %v404
  %v406 = vpop.f32.mrf.mxu0
  %v407 = vadd.f32 %v388, %v406
  %408 = vmatmul.bf16.gmra.mxu0 %v141
  %v409 = vpop.f32.mrf.mxu0
  %v410 = vadd.f32 %v391, %v409
  %v411 = vpop.f32.mrf.mxu0
  %v412 = vadd.f32 %v393, %v411
  %413 = vdwg.mxu0
  %414 = vmatpush.bf16.msra.mxu0 %v320
  %415 = vmatpush.bf16.msra.mxu0 %v319
  %416 = vmatpush.bf16.msra.mxu0 %v318
  %417 = vmatpush.bf16.msra.mxu0 %v317
  %418 = vmatpush.bf16.msra.mxu0 %v316
  %419 = vmatpush.bf16.msra.mxu0 %v315
  %420 = vmatpush.bf16.msra.mxu0 %v314
  %421 = vmatpush.bf16.msra.mxu0 %v313
  %422 = vmatmul.bf16.gmra.mxu0 %v137
  %v423 = vpop.f32.mrf.mxu0
  %v424 = vadd.f32 %v405, %v423
  %v425 = vpop.f32.mrf.mxu0
  %v426 = vadd.f32 %v407, %v425
  %427 = vmatmul.bf16.gmra.mxu0 %v142
  %v428 = vpop.f32.mrf.mxu0
  %v429 = vadd.f32 %v410, %v428
  %v430 = vpop.f32.mrf.mxu0
  %v431 = vadd.f32 %v412, %v430
  %432 = vdwg.mxu0
  %433 = vmatpush.bf16.msra.mxu0 %v328
  %434 = vmatpush.bf16.msra.mxu0 %v327
  %435 = vmatpush.bf16.msra.mxu0 %v326
  %436 = vmatpush.bf16.msra.mxu0 %v325
  %437 = vmatpush.bf16.msra.mxu0 %v324
  %438 = vmatpush.bf16.msra.mxu0 %v323
  %439 = vmatpush.bf16.msra.mxu0 %v322
  %440 = vmatpush.bf16.msra.mxu0 %v321
  %441 = vmatmul.bf16.gmra.mxu0 %v138
  %v442 = vpop.f32.mrf.mxu0
  %v443 = vadd.f32 %v424, %v442
  %v444 = vpop.f32.mrf.mxu0
  %v445 = vadd.f32 %v426, %v444
  %446 = vmatmul.bf16.gmra.mxu0 %v143
  %v447 = vpop.f32.mrf.mxu0
  %v448 = vadd.f32 %v429, %v447
  %v449 = vpop.f32.mrf.mxu0
  %v450 = vadd.f32 %v431, %v449
  %451 = vdwg.mxu0
  %452 = vmatpush.bf16.msra.mxu0 0
  %453 = vmatpush.bf16.msra.mxu0 0
  %454 = vmatpush.bf16.msra.mxu0 0
  %455 = vmatpush.bf16.msra.mxu0 0
  %456 = vmatpush.bf16.msra.mxu0 %v332
  %457 = vmatpush.bf16.msra.mxu0 %v331
  %458 = vmatpush.bf16.msra.mxu0 %v330
  %459 = vmatpush.bf16.msra.mxu0 %v329
  %460 = vmatmul.bf16.gmra.mxu0 %v371
  %v461 = vpop.f32.mrf.mxu0
  %v462 = vadd.f32 %v443, %v461
  %v463 = vpop.f32.mrf.mxu0
  %v464 = vadd.f32 %v445, %v463
  %465 = vmatmul.bf16.gmra.mxu0 %v374
  %v466 = vpop.f32.mrf.mxu0
  %v467 = vadd.f32 %v448, %v466
  %v468 = vpop.f32.mrf.mxu0
  %v469 = vadd.f32 %v450, %v468
  %470 = vdwg.mxu0
  %v471 = vmax.f32 %v462, 0.0
  %v472 = vmax.f32 %v464, 0.0
  %v473 = vmax.f32 %v467, 0.0
  %v474 = vmax.f32 %v469, 0.0
  %v475 = vpack.c.bf16 %v471, %v471
  %v476 = vpack.c.bf16 %v472, %v472
  %v477 = vpack.c.bf16 %v473, %v473
  %v478 = vpack.c.bf16 %v474, %v474
  %479 = vst [vmem:[%s3] sm:$0xf] %v475
  %480 = vst [vmem:[%s3 + $0x4] sm:$0xf] %v476
  %481 = vst [vmem:[%s3 + $0x8] sm:$0xf] %v477
  %482 = vst [vmem:[%s3 + $0xc] sm:$0xf] %v478
  // Predicated region
  $region14: #{osnet_reid_forward.2} parent=0 // pred_check
    _
  $region15: #{osnet_reid_forward.2} parent=0 // pred_check_branch
    %484 = sbr.rel (0) target = $region17
  $region16: #{osnet_reid_forward.2} parent=0 // pred_region
    _
  $region17: #{osnet_reid_forward.2} parent=0 // pred_fallthru
    _
  // Predicated region
  $region18: #{osnet_reid_forward.2} parent=0 // pred_check
    _
  $region19: #{osnet_reid_forward.2} parent=0 // pred_check_branch
    %486 = sbr.rel (0) target = $region21
  $region20: #{osnet_reid_forward.2} parent=0 // pred_region
    _
  $region21: #{osnet_reid_forward.2} parent=0 // pred_fallthru
    _

</llo_original>
